<compile_context>
chip_gen: v5e
topology: v5e:2x2
jax: 0.10.0
libtpu: 0.0.40
codegen_flags: <defaults>
</compile_context>

<pallas_src>
import jax
import jax.numpy as jnp
from jax import lax
from jax.experimental import pallas as pl
from jax.experimental.pallas import tpu as pltpu


def decoder_rnn_kernel(x_ref, h0_ref, w_ref, b_ref, out_ref, hfin_ref, h_all_ref):
    """Runs T GRU-decoder steps over x_ref (T, O), carrying hidden in-register.

    w_ref layout (rows, all f32, lane width 4H):
      [0      : O      , 0:H ]  folded embedding weight  (O, H)
      [O      : O + 2H , :   ]  fused GRU block           (2H, 4H)
      [O + 2H : O + 3H , 0:O ]  output projection         (H, O)
    b_ref layout (3, 4H): row0[0:H]=b_emb, row1=b_gru(r|z|n_i|n_h), row2[0:O]=b_out
    """
    T, O = x_ref.shape
    H = h0_ref.shape[-1]
    f32 = jnp.float32

    # Hoist every weight/bias load out of the time loop -> vreg resident.
    w_emb = w_ref[0:O, 0:H]                       # (O, H)
    w_gru = w_ref[O:O + 2 * H, :]                 # (2H, 4H)
    w_out = w_ref[O + 2 * H:O + 3 * H, 0:O]       # (H, O)
    b_emb = b_ref[0:1, 0:H]                       # (1, H)
    b_gru = b_ref[1:2, :]                         # (1, 4H)
    b_out = b_ref[2:3, 0:O]                       # (1, O)

    def step(t, h):
        x_t = x_ref[pl.ds(t, 1), :]                                           # (1, O)
        # folded embedding + ReLU
        emb = jnp.maximum(
            jnp.dot(x_t, w_emb, preferred_element_type=f32) + b_emb, 0.0)     # (1, H)
        # fused GRU gates: [emb | h] @ [[Wi_r Wi_z Wi_n 0],[Wh_r Wh_z 0 Wh_n]]
        xh = jnp.concatenate([emb, h], axis=1)                                # (1, 2H)
        g = jnp.dot(xh, w_gru, preferred_element_type=f32) + b_gru            # (1, 4H)
        r = jax.nn.sigmoid(g[:, 0:H])
        z = jax.nn.sigmoid(g[:, H:2 * H])
        n = jnp.tanh(g[:, 2 * H:3 * H] + r * g[:, 3 * H:4 * H])
        h_new = (1.0 - z) * n + z * h                                         # (1, H)
        h_all_ref[pl.ds(t, 1), :] = h_new
        return h_new

    h_final = lax.fori_loop(0, T, step, h0_ref[...], unroll=(T <= 16))
    hfin_ref[...] = h_final
    # One batched output projection + one dense store for all T steps.
    out_ref[...] = (jnp.dot(h_all_ref[...], w_out, preferred_element_type=f32)
                    + b_out)


def pack_params(p, hidden_size, output_size):
    """Host-side fold/pack of the original per-layer params into two slabs."""
    H, O = hidden_size, output_size
    L = 4 * H  # lane width of both slabs
    f32 = jnp.float32

    # Fold the two embedding Linears (valid: no nonlinearity between them).
    w_emb = (p["w1"] @ p["w2"]).astype(f32)                           # (O, H)
    b_emb = (p["b1"] @ p["w2"] + p["b2"]).astype(f32)                 # (1, H)

    zeros = jnp.zeros((H, H), f32)
    w_gru = jnp.concatenate([
        jnp.concatenate([p["wir"], p["wiz"], p["win"], zeros], axis=1),   # (H, 4H)
        jnp.concatenate([p["whr"], p["whz"], zeros, p["whn"]], axis=1),   # (H, 4H)
    ], axis=0).astype(f32)                                            # (2H, 4H)
    b_gru = jnp.concatenate(
        [p["bir"] + p["bhr"], p["biz"] + p["bhz"], p["bin"], p["bhn"]],
        axis=1).astype(f32)                                           # (1, 4H)

    w_out = p["wo"].astype(f32)                                       # (H, O)
    b_out = p["bo"].astype(f32)                                       # (1, O)

    def pad_lanes(a):
        return jnp.pad(a, ((0, 0), (0, L - a.shape[1])))

    w_slab = jnp.concatenate([pad_lanes(w_emb), w_gru, pad_lanes(w_out)], 0)  # (O+3H, 4H)
    b_slab = jnp.concatenate([pad_lanes(b_emb), b_gru, pad_lanes(b_out)], 0)  # (3, 4H)
    return w_slab, b_slab


def decoder_rnn_decode(x_seq, h0, w_slab, b_slab):
    """Run T decoder steps in ONE kernel launch.

    x_seq: (T, O) f32 per-step inputs; h0: (1, H) f32 initial hidden.
    Returns (out_seq (T, O), h_final (1, H)).
    """
    T, O = x_seq.shape
    H = h0.shape[-1]
    vmem = pl.BlockSpec(memory_space=pltpu.MemorySpace.VMEM)
    out_seq, h_fin = pl.pallas_call(
        decoder_rnn_kernel,
        out_shape=(
            jax.ShapeDtypeStruct((T, O), jnp.float32),
            jax.ShapeDtypeStruct((1, H), jnp.float32),
        ),
        in_specs=[vmem, vmem, vmem, vmem],
        out_specs=(vmem, vmem),
        scratch_shapes=[pltpu.VMEM((T, H), jnp.float32)],
    )(x_seq, h0, w_slab, b_slab)
    return out_seq, h_fin


def decoder_rnn_forward(x, hidden, w_slab, b_slab):
    """Single step, exactly the original module forward.

    x: (1, O) f32; hidden: (1, 1, H) f32. Returns ((1, O), (1, 1, H)).
    """
    out, h_fin = decoder_rnn_decode(x, hidden[0], w_slab, b_slab)
    return out, h_fin[None]


# ----------------------------- pure-JAX reference -----------------------------
def decoder_rnn_step_reference(x, h, p):
    e = (x @ p["w1"] + p["b1"]) @ p["w2"] + p["b2"]
    emb = jnp.maximum(e, 0.0)
    r = jax.nn.sigmoid(emb @ p["wir"] + p["bir"] + h @ p["whr"] + p["bhr"])
    z = jax.nn.sigmoid(emb @ p["wiz"] + p["biz"] + h @ p["whz"] + p["bhz"])
    n = jnp.tanh(emb @ p["win"] + p["bin"] + r * (h @ p["whn"] + p["bhn"]))
    h_new = (1.0 - z) * n + z * h
    out = h_new @ p["wo"] + p["bo"]
    return out, h_new


def decoder_rnn_decode_reference(x_seq, h0, p):
    outs, h = [], h0
    for t in range(x_seq.shape[0]):
        o, h = decoder_rnn_step_reference(x_seq[t:t + 1], h, p)
        outs.append(o)
    return jnp.concatenate(outs, 0), h


def init_params(key, hidden_size, output_size):
    H, O = hidden_size, output_size
    shapes = {
        "w1": (O, 2 * H), "b1": (1, 2 * H),
        "w2": (2 * H, H), "b2": (1, H),
        "wir": (H, H), "wiz": (H, H), "win": (H, H),
        "bir": (1, H), "biz": (1, H), "bin": (1, H),
        "whr": (H, H), "whz": (H, H), "whn": (H, H),
        "bhr": (1, H), "bhz": (1, H), "bhn": (1, H),
        "wo": (H, O), "bo": (1, O),
    }
    params = {}
    keys = jax.random.split(key, len(shapes))
    for k_, (name, shp) in zip(keys, sorted(shapes.items())):
        params[name] = (0.1 * jax.random.normal(k_, shp)).astype(jnp.float32)
    return params


if __name__ == "__main__":
    HIDDEN = 32
    OUTPUT = 8
    SEQ = 8

    root = jax.random.PRNGKey(0)
    k_params, k_x, k_h = jax.random.split(root, 3)

    params = init_params(k_params, HIDDEN, OUTPUT)
    w_slab, b_slab = pack_params(params, HIDDEN, OUTPUT)

    x_seq = jax.random.normal(k_x, (SEQ, OUTPUT), dtype=jnp.float32)
    hidden = jax.random.normal(k_h, (1, 1, HIDDEN), dtype=jnp.float32)

    # --- single-step check: exactly the module's forward(input, hidden) ---
    out1_ref, h1_ref = decoder_rnn_step_reference(x_seq[0:1], hidden[0], params)
    out1, h1 = decoder_rnn_forward(x_seq[0:1], hidden, w_slab, b_slab)
    jax.block_until_ready((out1, h1))
    assert out1.shape == (1, OUTPUT) and h1.shape == (1, 1, HIDDEN)
    assert jnp.allclose(out1, out1_ref, atol=2e-2, rtol=2e-2)
    assert jnp.allclose(h1[0], h1_ref, atol=2e-2, rtol=2e-2)

    # --- full decode loop internalized: one launch for SEQ steps ---
    outs_ref, hT_ref = decoder_rnn_decode_reference(x_seq, hidden[0], params)
    outs, hT = decoder_rnn_decode(x_seq, hidden[0], w_slab, b_slab)
    jax.block_until_ready((outs, hT))
    assert outs.shape == (SEQ, OUTPUT) and hT.shape == (1, HIDDEN)
    assert jnp.allclose(outs, outs_ref, atol=5e-2, rtol=5e-2)
    assert jnp.allclose(hT, hT_ref, atol=5e-2, rtol=5e-2)

    print("KERNEL_OK")
</pallas_src>

<mosaic_0001>
module attributes {stable_mosaic.version = 11 : i64} {
  func.func @decoder_rnn_kernel(%arg0: memref<1x8xf32, #tpu.memory_space<vmem>>, %arg1: memref<1x32xf32, #tpu.memory_space<vmem>>, %arg2: memref<104x128xf32, #tpu.memory_space<vmem>>, %arg3: memref<3x128xf32, #tpu.memory_space<vmem>>, %arg4: memref<1x8xf32, #tpu.memory_space<vmem>>, %arg5: memref<1x32xf32, #tpu.memory_space<vmem>>, %arg6: memref<1x32xf32, #tpu.memory_space<vmem>>) attributes {dimension_semantics = [], scalar_prefetch = 0 : i64, scratch_operands = 1 : i64, tpu.core_type = #tpu.core_type<tc>} {
    %c0 = arith.constant 0 : index
    %c0_0 = arith.constant 0 : index
    %0 = vector.load %arg2[%c0, %c0_0] : memref<104x128xf32, #tpu.memory_space<vmem>>, vector<8x32xf32>
    %c8 = arith.constant 8 : index
    %c0_1 = arith.constant 0 : index
    %1 = vector.load %arg2[%c8, %c0_1] : memref<104x128xf32, #tpu.memory_space<vmem>>, vector<64x128xf32>
    %c72 = arith.constant 72 : index
    %c0_2 = arith.constant 0 : index
    %2 = vector.load %arg2[%c72, %c0_2] : memref<104x128xf32, #tpu.memory_space<vmem>>, vector<32x8xf32>
    %c0_3 = arith.constant 0 : index
    %c0_4 = arith.constant 0 : index
    %3 = vector.load %arg3[%c0_3, %c0_4] : memref<3x128xf32, #tpu.memory_space<vmem>>, vector<1x32xf32>
    %c1 = arith.constant 1 : index
    %c0_5 = arith.constant 0 : index
    %4 = vector.load %arg3[%c1, %c0_5] : memref<3x128xf32, #tpu.memory_space<vmem>>, vector<1x128xf32>
    %c2 = arith.constant 2 : index
    %c0_6 = arith.constant 0 : index
    %5 = vector.load %arg3[%c2, %c0_6] : memref<3x128xf32, #tpu.memory_space<vmem>>, vector<1x8xf32>
    %c0_7 = arith.constant 0 : index
    %c0_8 = arith.constant 0 : index
    %6 = vector.load %arg1[%c0_7, %c0_8] : memref<1x32xf32, #tpu.memory_space<vmem>>, vector<1x32xf32>
    %c0_i32 = arith.constant 0 : i32
    %7 = arith.index_cast %c0_i32 : i32 to index
    %c0_9 = arith.constant 0 : index
    %8 = vector.load %arg0[%7, %c0_9] : memref<1x8xf32, #tpu.memory_space<vmem>>, vector<1x8xf32>
    %cst = arith.constant dense<0.000000e+00> : vector<1x32xf32>
    %9 = tpu.matmul %8, %0, %cst {dimension_numbers = #tpu.dot_dimension_numbers<[1], [0], [0], [1], [0, 0, 1, 1], [], []>} : vector<1x8xf32>, vector<8x32xf32>, vector<1x32xf32> -> vector<1x32xf32>
    %10 = arith.addf %9, %3 : vector<1x32xf32>
    %cst_10 = arith.constant 0.000000e+00 : f32
    %11 = vector.broadcast %cst_10 : f32 to vector<1x32xf32>
    %12 = arith.maximumf %10, %11 : vector<1x32xf32>
    %13 = tpu.concatenate %12, %6 in 1 : vector<1x32xf32>, vector<1x32xf32> -> vector<1x64xf32>
    %cst_11 = arith.constant dense<0.000000e+00> : vector<1x128xf32>
    %14 = tpu.matmul %13, %1, %cst_11 {dimension_numbers = #tpu.dot_dimension_numbers<[1], [0], [0], [1], [0, 0, 1, 1], [], []>} : vector<1x64xf32>, vector<64x128xf32>, vector<1x128xf32> -> vector<1x128xf32>
    %15 = arith.addf %14, %4 : vector<1x128xf32>
    %16 = vector.extract_strided_slice %15 {offsets = [0, 0], sizes = [1, 32], strides = [1, 1]} : vector<1x128xf32> to vector<1x32xf32>
    %17 = arith.negf %16 : vector<1x32xf32>
    %18 = math.exp %17 : vector<1x32xf32>
    %cst_12 = arith.constant 1.000000e+00 : f32
    %19 = vector.broadcast %cst_12 : f32 to vector<1x32xf32>
    %20 = arith.addf %19, %18 : vector<1x32xf32>
    %21 = arith.divf %19, %20 : vector<1x32xf32>
    %22 = vector.extract_strided_slice %15 {offsets = [0, 32], sizes = [1, 32], strides = [1, 1]} : vector<1x128xf32> to vector<1x32xf32>
    %23 = arith.negf %22 : vector<1x32xf32>
    %24 = math.exp %23 : vector<1x32xf32>
    %cst_13 = arith.constant 1.000000e+00 : f32
    %25 = vector.broadcast %cst_13 : f32 to vector<1x32xf32>
    %26 = arith.addf %25, %24 : vector<1x32xf32>
    %27 = arith.divf %25, %26 : vector<1x32xf32>
    %28 = vector.extract_strided_slice %15 {offsets = [0, 64], sizes = [1, 32], strides = [1, 1]} : vector<1x128xf32> to vector<1x32xf32>
    %29 = vector.extract_strided_slice %15 {offsets = [0, 96], sizes = [1, 32], strides = [1, 1]} : vector<1x128xf32> to vector<1x32xf32>
    %30 = arith.mulf %21, %29 : vector<1x32xf32>
    %31 = arith.addf %28, %30 : vector<1x32xf32>
    %32 = math.tanh %31 : vector<1x32xf32>
    %cst_14 = arith.constant 1.000000e+00 : f32
    %33 = vector.broadcast %cst_14 : f32 to vector<1x32xf32>
    %34 = arith.subf %33, %27 : vector<1x32xf32>
    %35 = arith.mulf %34, %32 : vector<1x32xf32>
    %36 = arith.mulf %27, %6 : vector<1x32xf32>
    %37 = arith.addf %35, %36 : vector<1x32xf32>
    %38 = arith.index_cast %c0_i32 : i32 to index
    %c0_15 = arith.constant 0 : index
    %39 = vector.load %arg6[%38, %c0_15] : memref<1x32xf32, #tpu.memory_space<vmem>>, vector<1x32xf32>
    tpu.vector_store %arg6[%38, %c0_15], %37 {strides = array<i32>} : memref<1x32xf32, #tpu.memory_space<vmem>>, vector<1x32xf32>,
    %c1_i32 = arith.constant 1 : i32
    %c0_16 = arith.constant 0 : index
    %c0_17 = arith.constant 0 : index
    %40 = vector.load %arg5[%c0_16, %c0_17] : memref<1x32xf32, #tpu.memory_space<vmem>>, vector<1x32xf32>
    tpu.vector_store %arg5[%c0_16, %c0_17], %37 {strides = array<i32>} : memref<1x32xf32, #tpu.memory_space<vmem>>, vector<1x32xf32>,
    %c0_18 = arith.constant 0 : index
    %c0_19 = arith.constant 0 : index
    %41 = vector.load %arg6[%c0_18, %c0_19] : memref<1x32xf32, #tpu.memory_space<vmem>>, vector<1x32xf32>
    %cst_20 = arith.constant dense<0.000000e+00> : vector<1x8xf32>
    %42 = tpu.matmul %41, %2, %cst_20 {dimension_numbers = #tpu.dot_dimension_numbers<[1], [0], [0], [1], [0, 0, 1, 1], [], []>} : vector<1x32xf32>, vector<32x8xf32>, vector<1x8xf32> -> vector<1x8xf32>
    %43 = arith.addf %42, %5 : vector<1x8xf32>
    %c0_21 = arith.constant 0 : index
    %c0_22 = arith.constant 0 : index
    %44 = vector.load %arg4[%c0_21, %c0_22] : memref<1x8xf32, #tpu.memory_space<vmem>>, vector<1x8xf32>
    tpu.vector_store %arg4[%c0_21, %c0_22], %43 {strides = array<i32>} : memref<1x8xf32, #tpu.memory_space<vmem>>, vector<1x8xf32>,
    return
  }
}

</mosaic_0001>

<llo_original>
// kernel: tpu_custom_call.1
$region0: #{tpu_custom_call.1}
  #allocation0 [shape = 'u32[]', space=smem, size = 0x4, offset = 0x4, fixed_abs, tag = 'smem constant byte address 0x4 - core index']
  #allocation1 [shape = 'u32[72,128]{1,0:T(1,128)}', space=vmem, size = 0x9000, scoped, tag = 'internal scratch']
  #allocation2 [shape = 'f32[1,32]{1,0:T(1,128)}', space=vmem, size = 0x200, scoped, tag = 'scratch operand']
  %s0 = inlined_call_operand.hbm [shape: f32[1,8], index: 0, kind: input, shape index: {}]
  %s1 = inlined_call_operand.hbm [shape: f32[1,32], index: 1, kind: input, shape index: {}]
  %s2 = inlined_call_operand.hbm [shape: f32[104,128], index: 2, kind: input, shape index: {}]
  %s3 = inlined_call_operand.hbm [shape: f32[3,128], index: 3, kind: input, shape index: {}]
  %s4 = inlined_call_operand.hbm [shape: f32[1,8], index: 4, kind: output, shape index: {0}]
  %s5 = inlined_call_operand.hbm [shape: f32[1,32], index: 5, kind: output, shape index: {1}]
  %6 = xla_tuple %s4, %s5
  %s7 = sld [smem:[#allocation0]]
  $region50: #{tpu_custom_call.1} parent=0
    _
  %s9 = ssub.s32 1, %s7
  %s10 = scalar_select 0, %s9, %s7
  $region1: #{tpu_custom_call.1} parent=0
    #allocation3 [shape = 'u8[512]{0}', space=vmem, size = 0x400, scoped, tag = 'input window, operand 0, single buffered']
    #allocation4 [shape = 's32[1]{0}', space=sflag, size = 0x4, scoped, tag = 'scoped memory for tpu_custom_call.1']
    #allocation5 [shape = 's32[1]{0}', space=sflag, size = 0x4, scoped, tag = 'scoped memory for tpu_custom_call.1']
    #allocation6 [shape = 'u8[512]{0}', space=vmem, size = 0x400, scoped, tag = 'input window, operand 1, single buffered']
    #allocation7 [shape = 's32[1]{0}', space=sflag, size = 0x4, scoped, tag = 'scoped memory for tpu_custom_call.1']
    #allocation8 [shape = 'u8[53248]{0}', space=vmem, size = 0xd000, scoped, tag = 'input window, operand 2, single buffered']
    #allocation9 [shape = 'u8[2048]{0}', space=vmem, size = 0x800, scoped, tag = 'input window, operand 3, single buffered']
    #allocation10 [shape = 's32[1]{0}', space=sflag, size = 0x4, scoped, tag = 'scoped memory for tpu_custom_call.1']
    #allocation11 [shape = 'u8[512]{0}', space=vmem, size = 0x400, scoped, tag = 'output window, operand 0, single buffered']
    #allocation12 [shape = 'u8[512]{0}', space=vmem, size = 0x400, scoped, tag = 'output window, operand 1, single buffered']
    #allocation13 [shape = 's32[1]{0}', space=sflag, size = 0x4, scoped, tag = 'scoped memory for tpu_custom_call.1']
    %11 = vsyncpa [#allocation4], 0
    %12 = vsyncpa [#allocation7], 0
    %13 = vsyncpa [#allocation10], 0
    %14 = vsyncpa [#allocation5], 0
    %15 = vsyncpa [#allocation13], 0
    // Predicated region
    $region2: #{tpu_custom_call.1} parent=1 // pred_check
      _
    $region3: #{tpu_custom_call.1} parent=1 // pred_check_branch
      %17 = sbr.rel (0) target = $region5
    $region4: #{tpu_custom_call.1} parent=1 // pred_region
      %19 = vsyncadd [#allocation4], 0
      %s21 = sshll.u32 %s0, 4
      %s22 = int_to_ptr.hbm [resolvable:$true] %s21
      %s23 = sshll.u32 [#allocation3], 4
      %s24 = int_to_ptr.vmem [resolvable:$true] %s23
      %26 = dma.hbm_to_vmem [thread:$0]  %s22, 16, %s24, [#allocation4]
    $region5: #{tpu_custom_call.1} parent=1 // pred_fallthru
      _
    // Predicated region
    $region6: #{tpu_custom_call.1} parent=1 // pred_check
      _
    $region7: #{tpu_custom_call.1} parent=1 // pred_check_branch
      %28 = sbr.rel (0) target = $region9
    $region8: #{tpu_custom_call.1} parent=1 // pred_region
      %30 = vsyncadd [#allocation7], 0
      %s32 = sshll.u32 %s1, 4
      %s33 = int_to_ptr.hbm [resolvable:$true] %s32
      %s34 = sshll.u32 [#allocation6], 4
      %s35 = int_to_ptr.vmem [resolvable:$true] %s34
      %37 = dma.hbm_to_vmem [thread:$0]  %s33, 16, %s35, [#allocation7]
    $region9: #{tpu_custom_call.1} parent=1 // pred_fallthru
      _
    // Predicated region
    $region10: #{tpu_custom_call.1} parent=1 // pred_check
      _
    $region11: #{tpu_custom_call.1} parent=1 // pred_check_branch
      %39 = sbr.rel (0) target = $region13
    $region12: #{tpu_custom_call.1} parent=1 // pred_region
      %41 = vsyncadd [#allocation7], 0
      %s42 = sshll.u32 %s2, 4
      %s43 = int_to_ptr.hbm [resolvable:$true] %s42
      %s44 = sshll.u32 [#allocation8], 4
      %s45 = int_to_ptr.vmem [resolvable:$true] %s44
      %50 = dma.hbm_to_vmem [thread:$0]  %s43, 1664, %s45, [#allocation7], 128, 128, 8
    $region13: #{tpu_custom_call.1} parent=1 // pred_fallthru
      _
    // Predicated region
    $region14: #{tpu_custom_call.1} parent=1 // pred_check
      _
    $region15: #{tpu_custom_call.1} parent=1 // pred_check_branch
      %52 = sbr.rel (0) target = $region17
    $region16: #{tpu_custom_call.1} parent=1 // pred_region
      %54 = vsyncadd [#allocation10], 0
      %s56 = sshll.u32 %s3, 4
      %s57 = int_to_ptr.hbm [resolvable:$true] %s56
      %s58 = sshll.u32 [#allocation9], 4
      %s59 = int_to_ptr.vmem [resolvable:$true] %s58
      %61 = dma.hbm_to_vmem [thread:$0]  %s57, 64, %s59, [#allocation10]
    $region17: #{tpu_custom_call.1} parent=1 // pred_fallthru
      _
    // Predicated region
    $region18: #{tpu_custom_call.1} parent=1 // pred_check
      _
    $region19: #{tpu_custom_call.1} parent=1 // pred_check_branch
      %63 = sbr.rel (0) target = $region21
    $region20: #{tpu_custom_call.1} parent=1 // pred_region
      %65 = dma.done [#allocation4], 16
    $region21: #{tpu_custom_call.1} parent=1 // pred_fallthru
      _
    // Predicated region
    $region22: #{tpu_custom_call.1} parent=1 // pred_check
      _
    $region23: #{tpu_custom_call.1} parent=1 // pred_check_branch
      %67 = sbr.rel (0) target = $region25
    $region24: #{tpu_custom_call.1} parent=1 // pred_region
      %69 = dma.done [#allocation7], 16
    $region25: #{tpu_custom_call.1} parent=1 // pred_fallthru
      _
    // Predicated region
    $region26: #{tpu_custom_call.1} parent=1 // pred_check
      _
    $region27: #{tpu_custom_call.1} parent=1 // pred_check_branch
      %71 = sbr.rel (0) target = $region29
    $region28: #{tpu_custom_call.1} parent=1 // pred_region
      %73 = dma.done [#allocation7], 1664
    $region29: #{tpu_custom_call.1} parent=1 // pred_fallthru
      _
    // Predicated region
    $region30: #{tpu_custom_call.1} parent=1 // pred_check
      _
    $region31: #{tpu_custom_call.1} parent=1 // pred_check_branch
      %75 = sbr.rel (0) target = $region33
    $region32: #{tpu_custom_call.1} parent=1 // pred_region
      %77 = dma.done [#allocation10], 64
    $region33: #{tpu_custom_call.1} parent=1 // pred_fallthru
      _
    %v78 = vld [vmem:[#allocation8] sm:$0xff]
    %v79 = vld [vmem:[#allocation8 + $0x8] sm:$0xff]
    %v80 = vld [vmem:[#allocation8 + $0x10] sm:$0xff]
    %v81 = vld [vmem:[#allocation8 + $0x18] sm:$0xff]
    %v82 = vld [vmem:[#allocation8 + $0x20] sm:$0xff]
    %v83 = vld [vmem:[#allocation8 + $0x28] sm:$0xff]
    %v84 = vld [vmem:[#allocation8 + $0x30] sm:$0xff]
    %v85 = vld [vmem:[#allocation8 + $0x38] sm:$0xff]
    %v86 = vld [vmem:[#allocation8 + $0x40] sm:$0xff]
    %v87 = vld [vmem:[#allocation8 + $0x48] sm:$0xff]
    %v88 = vld [vmem:[#allocation8 + $0x50] sm:$0xff]
    %v89 = vld [vmem:[#allocation8 + $0x58] sm:$0xff]
    %v90 = vld [vmem:[#allocation8 + $0x60] sm:$0xff]
    %v91 = vld [vmem:[#allocation9] sm:$0x1]
    %v92 = vld [vmem:[#allocation9 + $0x1] sm:$0x1]
    %v93 = vld [vmem:[#allocation9 + $0x2] sm:$0x1]
    %v94 = vld [vmem:[#allocation6] sm:$0x1]
    %v95 = vld [vmem:[#allocation3] sm:$0x1]
    %vm96 = vcmask 64512
    %v98 = vsel %vm96, %v95, 0
    %100 = vmatpush.msra.mxu0 0.0
    %101 = vmatpush.msra.mxu0 0.0
    %102 = vmatpush.msra.mxu0 0.0
    %103 = vmatpush.msra.mxu0 0.0
    %104 = vmatpush.msra.mxu0 0.0
    %105 = vmatpush.msra.mxu0 0.0
    %106 = vmatpush.msra.mxu0 0.0
    %107 = vmatpush.msra.mxu0 0.0
    %108 = vmatpush.msra.mxu0 0.0
    %109 = vmatpush.msra.mxu0 0.0
    %110 = vmatpush.msra.mxu0 0.0
    %111 = vmatpush.msra.mxu0 0.0
    %112 = vmatpush.msra.mxu0 0.0
    %113 = vmatpush.msra.mxu0 0.0
    %114 = vmatpush.msra.mxu0 0.0
    %115 = vmatpush.msra.mxu0 %v78
    %116 = vmatmul.f32.gmra.mxu0 %v98
    %v117 = vpop.f32.mrf.mxu0
    %v118 = vadd.f32 %v91, %v117
    %119 = vdwg.mxu0
    %v120 = vmax.f32 %v118, 0.0
    %v122 = vperm.slane %v94, 0
    %123 = vrot.lane.b32.xlu0 %v122, 32
    %v124 = vpop.permute.xlu0 %123
    %vm126 = vcmask 261120
    %v127 = vsel %vm126, %v120, %v124
    %vm128 = vcmask 523264
    %v130 = vsel %vm128, %v127, 0
    %132 = vmatpush.msra.mxu0 0.0
    %133 = vmatpush.msra.mxu0 0.0
    %134 = vmatpush.msra.mxu0 0.0
    %135 = vmatpush.msra.mxu0 0.0
    %136 = vmatpush.msra.mxu0 0.0
    %137 = vmatpush.msra.mxu0 0.0
    %138 = vmatpush.msra.mxu0 0.0
    %139 = vmatpush.msra.mxu0 0.0
    %140 = vmatpush.msra.mxu0 %v86
    %141 = vmatpush.msra.mxu0 %v85
    %142 = vmatpush.msra.mxu0 %v84
    %143 = vmatpush.msra.mxu0 %v83
    %144 = vmatpush.msra.mxu0 %v82
    %145 = vmatpush.msra.mxu0 %v81
    %146 = vmatpush.msra.mxu0 %v80
    %147 = vmatpush.msra.mxu0 %v79
    %148 = vmatmul.f32.gmra.mxu0 %v130
    %v149 = vpop.f32.mrf.mxu0
    %v150 = vadd.f32 %v92, %v149
    %151 = vdwg.mxu0
    %v152 = vxor.u32 %v150, 2147483648
    %v153 = vmul.f32 %v152, 1.442695
    %v154 = vpow.pop %v153
    %v155 = vadd.f32 %v154, 1.0
    %v156 = vrcp.pop %v155
    %v157 = vmul.f32 %v155, %v156
    %v158 = vsub.f32 1.0, %v157
    %v159 = vmul.f32 %v156, %v158
    %v160 = vadd.f32 %v156, %v159
    %vm161 = vweird.f32 %v155
    %vm162 = vweird.f32 %v156
    %vm163 = vmor %vm161, %vm162
    %v164 = vsel %vm163, %v156, %v160
    %v165 = vand.u32 2147483647, %v155
    %vm166 = vcmp.eq.f32.partialorder %v165, 8.507059e+37
    %v167 = vand.u32 %v155, 2147483648
    %v168 = vor.u32 1.1754944e-38, %v167
    %v169 = vsel %vm166, %v168, %v164
    %v170 = vmul.f32 1.0, %v169
    %172 = vrot.lane.b32.xlu0 %v150, 32
    %v173 = vpop.permute.xlu0 %172
    %v175 = vmul.f32 %v170, %v173
    %177 = vrot.lane.b32.xlu0 %v175, 64
    %v178 = vpop.permute.xlu0 %177
    %v180 = vadd.f32 %v150, %v178
    %v181 = vtanh.pop %v180
    %v182 = vsub.f32 1.0, %v170
    %184 = vrot.lane.b32.xlu0 %v181, 96
    %v185 = vpop.permute.xlu0 %184
    %v187 = vmul.f32 %v182, %v185
    %v188 = vmul.f32 %v170, %v124
    %v189 = vadd.f32 %v187, %v188
    %191 = vrot.lane.b32.xlu0 %v189, 96
    %v192 = vpop.permute.xlu0 %191
    %vm194 = vcmask 253952
    %195 = vst.msk [vmem:[#allocation2] sm:$0x1] %vm194, %v192
    %196 = vst.msk [vmem:[#allocation12] sm:$0x1] %vm194, %v192
    %v197 = vld [vmem:[#allocation2] sm:$0x1]
    %v199 = vsel %vm126, %v197, 0
    %201 = vmatpush.msra.mxu0 0.0
    %202 = vmatpush.msra.mxu0 0.0
    %203 = vmatpush.msra.mxu0 0.0
    %204 = vmatpush.msra.mxu0 0.0
    %205 = vmatpush.msra.mxu0 0.0
    %206 = vmatpush.msra.mxu0 0.0
    %207 = vmatpush.msra.mxu0 0.0
    %208 = vmatpush.msra.mxu0 0.0
    %209 = vmatpush.msra.mxu0 0.0
    %210 = vmatpush.msra.mxu0 0.0
    %211 = vmatpush.msra.mxu0 0.0
    %212 = vmatpush.msra.mxu0 0.0
    %213 = vmatpush.msra.mxu0 %v90
    %214 = vmatpush.msra.mxu0 %v89
    %215 = vmatpush.msra.mxu0 %v88
    %216 = vmatpush.msra.mxu0 %v87
    %217 = vmatmul.f32.gmra.mxu0 %v199
    %v218 = vpop.f32.mrf.mxu0
    %v219 = vadd.f32 %v93, %v218
    %220 = vdwg.mxu0
    %vm221 = vcmask 57344
    %222 = vst.msk [vmem:[#allocation11] sm:$0x1] %vm221, %v219
    // Predicated region
    $region34: #{tpu_custom_call.1} parent=1 // pred_check
      _
    $region35: #{tpu_custom_call.1} parent=1 // pred_check_branch
      %224 = sbr.rel (0) target = $region37
    $region36: #{tpu_custom_call.1} parent=1 // pred_region
      %226 = vsyncadd [#allocation5], 0
      %s228 = sshll.u32 [#allocation11], 4
      %s229 = int_to_ptr.vmem [resolvable:$true] %s228
      %s230 = sshll.u32 %s4, 4
      %s231 = int_to_ptr.hbm [resolvable:$true] %s230
      %233 = dma.vmem_to_hbm [thread:$0]  %s229, 16, %s231, [#allocation5]
    $region37: #{tpu_custom_call.1} parent=1 // pred_fallthru
      _
    // Predicated region
    $region38: #{tpu_custom_call.1} parent=1 // pred_check
      _
    $region39: #{tpu_custom_call.1} parent=1 // pred_check_branch
      %235 = sbr.rel (0) target = $region41
    $region40: #{tpu_custom_call.1} parent=1 // pred_region
      %237 = vsyncadd [#allocation13], 0
      %s239 = sshll.u32 [#allocation12], 4
      %s240 = int_to_ptr.vmem [resolvable:$true] %s239
      %s241 = sshll.u32 %s5, 4
      %s242 = int_to_ptr.hbm [resolvable:$true] %s241
      %244 = dma.vmem_to_hbm [thread:$0]  %s240, 16, %s242, [#allocation13]
    $region41: #{tpu_custom_call.1} parent=1 // pred_fallthru
      _
    // Predicated region
    $region42: #{tpu_custom_call.1} parent=1 // pred_check
      _
    $region43: #{tpu_custom_call.1} parent=1 // pred_check_branch
      %246 = sbr.rel (0) target = $region45
    $region44: #{tpu_custom_call.1} parent=1 // pred_region
      %248 = dma.done [#allocation5], 16
    $region45: #{tpu_custom_call.1} parent=1 // pred_fallthru
      _
    // Predicated region
    $region46: #{tpu_custom_call.1} parent=1 // pred_check
      _
    $region47: #{tpu_custom_call.1} parent=1 // pred_check_branch
      %250 = sbr.rel (0) target = $region49
    $region48: #{tpu_custom_call.1} parent=1 // pred_region
      %252 = dma.done [#allocation13], 16
    $region49: #{tpu_custom_call.1} parent=1 // pred_fallthru
      _
    %253 = vsyncpa [#allocation4], 1
    %254 = vsyncpa [#allocation7], 1
    %255 = vsyncpa [#allocation10], 1
    %256 = vsyncpa [#allocation5], 1
    %257 = vsyncpa [#allocation13], 1

</llo_original>
